<compile_context>
chip_gen: v5e
topology: v5e:2x2
jax: 0.10.0
libtpu: 0.0.40
codegen_flags: <defaults>
</compile_context>

<pallas_src>
import jax
import jax.numpy as jnp
from jax.experimental import pallas as pl
from jax.experimental.pallas import tpu as pltpu


def _round_up(x, m):
    return (x + m - 1) // m * m


def _bayes_linear_kernel(x_ref, wmu_ref, wls_ref, weps_ref,
                         bmu_ref, bls_ref, beps_ref, o_ref, acc_ref):
    k = pl.program_id(1)

    @pl.when(k == 0)
    def _init():
        acc_ref[...] = jnp.zeros_like(acc_ref)

    # Sample this (TK, TN) weight tile in f32 (VPU + EUP), cast to bf16 only
    # for the MXU, accumulate in f32.
    w = wmu_ref[...] + weps_ref[...] * jnp.exp(0.5 * wls_ref[...])
    acc_ref[...] += jnp.dot(x_ref[...].astype(jnp.bfloat16),
                            w.astype(jnp.bfloat16),
                            preferred_element_type=jnp.float32)

    @pl.when(k == pl.num_programs(1) - 1)
    def _finalize():
        # Bias reparameterization only once per output tile (not per K step).
        b = bmu_ref[...] + beps_ref[...] * jnp.exp(0.5 * bls_ref[...])
        o_ref[...] = (acc_ref[...] + b).astype(o_ref.dtype)


def bayesian_layer_forward(x, weight_mu, weight_logsigma, eps_w,
                           bias_mu, bias_logsigma, eps_b,
                           *, tile_n=512, tile_k=512):
    """x: (B, I); weight params: (O, I) as in F.linear; bias params: (O,)."""
    B, I = x.shape
    O = weight_mu.shape[0]

    # Pre-transpose weight-shaped params to (I, O): one-time layout change in
    # the wrapper, removes the per-invocation in-kernel transpose.
    wmu_t = weight_mu.T
    wls_t = weight_logsigma.T
    weps_t = eps_w.T

    # Tile sizes (lane-dense, (8,128)-aligned). Defaults sized so that
    # 3 weight-shaped inputs x 2 buffers x tile stays well under v7x VMEM.
    tn = min(tile_n, _round_up(O, 128))
    tk = min(tile_k, _round_up(I, 128))
    B_pad = _round_up(max(B, 8), 8)
    I_pad = _round_up(I, tk)
    O_pad = _round_up(O, tn)

    def pad2(a, rows, cols):
        return jnp.pad(a, ((0, rows - a.shape[0]), (0, cols - a.shape[1])))

    # Zero padding is semantically safe: padded eps rows/cols are 0, so the
    # sampled padded weights are mu_pad (= 0) and contribute nothing; padded
    # output columns are sliced off below.
    x_p = pad2(x, B_pad, I_pad)
    wmu_p = pad2(wmu_t, I_pad, O_pad)
    wls_p = pad2(wls_t, I_pad, O_pad)
    weps_p = pad2(weps_t, I_pad, O_pad)
    bmu_p = pad2(bias_mu.reshape(1, O), 1, O_pad)
    bls_p = pad2(bias_logsigma.reshape(1, O), 1, O_pad)
    beps_p = pad2(eps_b.reshape(1, O), 1, O_pad)

    grid = (O_pad // tn, I_pad // tk)   # (output tiles "parallel", K "arbitrary")

    cost = pl.CostEstimate(
        flops=2 * B_pad * O_pad * I_pad,
        transcendentals=O_pad * I_pad + O_pad,
        bytes_accessed=(3 * O_pad * I_pad + B_pad * I_pad
                        + B_pad * O_pad + 3 * O_pad) * 4,
    )

    out_p = pl.pallas_call(
        _bayes_linear_kernel,
        out_shape=jax.ShapeDtypeStruct((B_pad, O_pad), x.dtype),
        grid_spec=pltpu.PrefetchScalarGridSpec(
            num_scalar_prefetch=0,
            grid=grid,
            in_specs=[
                pl.BlockSpec((B_pad, tk), lambda n, k: (0, k)),   # x
                pl.BlockSpec((tk, tn), lambda n, k: (k, n)),      # weight_mu (I,O)
                pl.BlockSpec((tk, tn), lambda n, k: (k, n)),      # weight_logsigma
                pl.BlockSpec((tk, tn), lambda n, k: (k, n)),      # eps_w
                pl.BlockSpec((1, tn), lambda n, k: (0, n)),       # bias_mu
                pl.BlockSpec((1, tn), lambda n, k: (0, n)),       # bias_logsigma
                pl.BlockSpec((1, tn), lambda n, k: (0, n)),       # eps_b
            ],
            out_specs=pl.BlockSpec((B_pad, tn), lambda n, k: (0, n)),
            scratch_shapes=[pltpu.VMEM((B_pad, tn), jnp.float32)],
        ),
        compiler_params=pltpu.CompilerParams(
            dimension_semantics=("parallel", "arbitrary"),
            vmem_limit_bytes=32 * 1024 * 1024,
        ),
        cost_estimate=cost,
    )(x_p, wmu_p, wls_p, weps_p, bmu_p, bls_p, beps_p)

    return out_p[:B, :O]


def _reference_forward(x, weight_mu, weight_logsigma, eps_w,
                       bias_mu, bias_logsigma, eps_b):
    w = weight_mu + eps_w * jnp.exp(0.5 * weight_logsigma)
    b = bias_mu + eps_b * jnp.exp(0.5 * bias_logsigma)
    return x @ w.T + b


def _reference_forward_bf16(x, weight_mu, weight_logsigma, eps_w,
                            bias_mu, bias_logsigma, eps_b):
    # Mimics the kernel's MXU precision: bf16 operands, f32 accumulation.
    w = weight_mu + eps_w * jnp.exp(0.5 * weight_logsigma)
    b = bias_mu + eps_b * jnp.exp(0.5 * bias_logsigma)
    xw = jnp.dot(x.astype(jnp.bfloat16).astype(jnp.float32),
                 w.T.astype(jnp.bfloat16).astype(jnp.float32),
                 preferred_element_type=jnp.float32)
    return xw + b


if __name__ == "__main__":
    key = jax.random.PRNGKey(0)
    k_x, k_wmu, k_wls, k_bls, k_ew, k_eb = jax.random.split(key, 6)

    # Small, deliberately non-aligned shapes (exercise padding, multi-tile grid).
    batch, input_dim, output_dim = 4, 200, 136

    # Parameter init mirroring the module's __init__:
    #   weight_mu ~ xavier_uniform, weight_logsigma ~ U(-5, -4),
    #   bias_mu = 0, bias_logsigma ~ U(-5, -4).
    xav = jnp.sqrt(6.0 / (input_dim + output_dim))
    weight_mu = jax.random.uniform(k_wmu, (output_dim, input_dim),
                                   minval=-xav, maxval=xav, dtype=jnp.float32)
    weight_logsigma = jax.random.uniform(k_wls, (output_dim, input_dim),
                                         minval=-5.0, maxval=-4.0,
                                         dtype=jnp.float32)
    bias_mu = jnp.zeros((output_dim,), jnp.float32)
    bias_logsigma = jax.random.uniform(k_bls, (output_dim,),
                                       minval=-5.0, maxval=-4.0,
                                       dtype=jnp.float32)

    # Input and reparameterization noise (torch.randn_like equivalent).
    x = jax.random.normal(k_x, (batch, input_dim), dtype=jnp.float32)
    eps_w = jax.random.normal(k_ew, (output_dim, input_dim), dtype=jnp.float32)
    eps_b = jax.random.normal(k_eb, (output_dim,), dtype=jnp.float32)

    # Small tiles here so the 2-D grid (2 output tiles x 2 K tiles) and the
    # accumulator init/finalize paths are actually exercised.
    out = bayesian_layer_forward(x, weight_mu, weight_logsigma, eps_w,
                                 bias_mu, bias_logsigma, eps_b,
                                 tile_n=128, tile_k=128)
    out = jax.block_until_ready(out)

    ref_bf16 = _reference_forward_bf16(x, weight_mu, weight_logsigma, eps_w,
                                       bias_mu, bias_logsigma, eps_b)
    ref_f32 = _reference_forward(x, weight_mu, weight_logsigma, eps_w,
                                 bias_mu, bias_logsigma, eps_b)

    assert out.shape == (batch, output_dim)
    # Tight check against a reference with matching (bf16-in / f32-acc) matmul precision.
    assert jnp.allclose(out, ref_bf16, atol=1e-3, rtol=1e-3)
    # Loose sanity check against the exact f32 module math.
    assert jnp.allclose(out, ref_f32, atol=5e-2, rtol=5e-2)

    print("KERNEL_OK")
</pallas_src>

<mosaic_0001>
module attributes {stable_mosaic.version = 11 : i64} {
  func.func @_bayes_linear_kernel(%arg0: i32, %arg1: i32, %arg2: memref<8x128xf32, #tpu.memory_space<vmem>>, %arg3: memref<128x128xf32, #tpu.memory_space<vmem>>, %arg4: memref<128x128xf32, #tpu.memory_space<vmem>>, %arg5: memref<128x128xf32, #tpu.memory_space<vmem>>, %arg6: memref<1x128xf32, #tpu.memory_space<vmem>>, %arg7: memref<1x128xf32, #tpu.memory_space<vmem>>, %arg8: memref<1x128xf32, #tpu.memory_space<vmem>>, %arg9: memref<8x128xf32, #tpu.memory_space<vmem>>, %arg10: memref<8x128xf32, #tpu.memory_space<vmem>>) attributes {dimension_semantics = [#tpu.dimension_semantics<parallel>, #tpu.dimension_semantics<arbitrary>], iteration_bounds = array<i64: 2, 2>, scalar_prefetch = 0 : i64, scratch_operands = 1 : i64, tpu.core_type = #tpu.core_type<tc>, window_params = [{transform_indices = @transform_0, window_bounds = array<i64: 8, 128>}, {transform_indices = @transform_1, window_bounds = array<i64: 128, 128>}, {transform_indices = @transform_2, window_bounds = array<i64: 128, 128>}, {transform_indices = @transform_3, window_bounds = array<i64: 128, 128>}, {transform_indices = @transform_4, window_bounds = array<i64: 1, 128>}, {transform_indices = @transform_5, window_bounds = array<i64: 1, 128>}, {transform_indices = @transform_6, window_bounds = array<i64: 1, 128>}, {transform_indices = @transform_7, window_bounds = array<i64: 8, 128>}]} {
    %c0_i32 = arith.constant 0 : i32
    %0 = arith.cmpi eq, %arg1, %c0_i32 : i32
    %1 = arith.extui %0 : i1 to i32
    %c0_i32_0 = arith.constant 0 : i32
    %2 = arith.cmpi ne, %1, %c0_i32_0 : i32
    scf.if %2 {
      %cst_14 = arith.constant 0.000000e+00 : f32
      %21 = vector.broadcast %cst_14 : f32 to vector<8x128xf32>
      %c0_15 = arith.constant 0 : index
      %c0_16 = arith.constant 0 : index
      %22 = vector.load %arg10[%c0_15, %c0_16] : memref<8x128xf32, #tpu.memory_space<vmem>>, vector<8x128xf32>
      tpu.vector_store %arg10[%c0_15, %c0_16], %21 {strides = array<i32>} : memref<8x128xf32, #tpu.memory_space<vmem>>, vector<8x128xf32>,
    } else {
    }
    %c0 = arith.constant 0 : index
    %c0_1 = arith.constant 0 : index
    %3 = vector.load %arg3[%c0, %c0_1] : memref<128x128xf32, #tpu.memory_space<vmem>>, vector<128x128xf32>
    %c0_2 = arith.constant 0 : index
    %c0_3 = arith.constant 0 : index
    %4 = vector.load %arg5[%c0_2, %c0_3] : memref<128x128xf32, #tpu.memory_space<vmem>>, vector<128x128xf32>
    %c0_4 = arith.constant 0 : index
    %c0_5 = arith.constant 0 : index
    %5 = vector.load %arg4[%c0_4, %c0_5] : memref<128x128xf32, #tpu.memory_space<vmem>>, vector<128x128xf32>
    %cst = arith.constant 5.000000e-01 : f32
    %6 = vector.broadcast %cst : f32 to vector<128x128xf32>
    %7 = arith.mulf %6, %5 : vector<128x128xf32>
    %8 = math.exp %7 : vector<128x128xf32>
    %9 = arith.mulf %4, %8 : vector<128x128xf32>
    %10 = arith.addf %3, %9 : vector<128x128xf32>
    %c0_6 = arith.constant 0 : index
    %c0_7 = arith.constant 0 : index
    %11 = vector.load %arg10[%c0_6, %c0_7] : memref<8x128xf32, #tpu.memory_space<vmem>>, vector<8x128xf32>
    %c0_8 = arith.constant 0 : index
    %c0_9 = arith.constant 0 : index
    %12 = vector.load %arg2[%c0_8, %c0_9] : memref<8x128xf32, #tpu.memory_space<vmem>>, vector<8x128xf32>
    %13 = arith.truncf %12 : vector<8x128xf32> to vector<8x128xbf16>
    %14 = arith.truncf %10 : vector<128x128xf32> to vector<128x128xbf16>
    %cst_10 = arith.constant dense<0.000000e+00> : vector<8x128xf32>
    %15 = tpu.matmul %13, %14, %cst_10 {dimension_numbers = #tpu.dot_dimension_numbers<[1], [0], [0], [1], [0, 0, 1, 1], [], []>} : vector<8x128xbf16>, vector<128x128xbf16>, vector<8x128xf32> -> vector<8x128xf32>
    %16 = arith.addf %11, %15 : vector<8x128xf32>
    %c0_11 = arith.constant 0 : index
    %c0_12 = arith.constant 0 : index
    %17 = vector.load %arg10[%c0_11, %c0_12] : memref<8x128xf32, #tpu.memory_space<vmem>>, vector<8x128xf32>
    tpu.vector_store %arg10[%c0_11, %c0_12], %16 {strides = array<i32>} : memref<8x128xf32, #tpu.memory_space<vmem>>, vector<8x128xf32>,
    %c1_i32 = arith.constant 1 : i32
    %18 = arith.cmpi eq, %arg1, %c1_i32 : i32
    %19 = arith.extui %18 : i1 to i32
    %c0_i32_13 = arith.constant 0 : i32
    %20 = arith.cmpi ne, %19, %c0_i32_13 : i32
    scf.if %20 {
      %c0_14 = arith.constant 0 : index
      %c0_15 = arith.constant 0 : index
      %21 = vector.load %arg6[%c0_14, %c0_15] : memref<1x128xf32, #tpu.memory_space<vmem>>, vector<1x128xf32>
      %c0_16 = arith.constant 0 : index
      %c0_17 = arith.constant 0 : index
      %22 = vector.load %arg8[%c0_16, %c0_17] : memref<1x128xf32, #tpu.memory_space<vmem>>, vector<1x128xf32>
      %c0_18 = arith.constant 0 : index
      %c0_19 = arith.constant 0 : index
      %23 = vector.load %arg7[%c0_18, %c0_19] : memref<1x128xf32, #tpu.memory_space<vmem>>, vector<1x128xf32>
      %cst_20 = arith.constant 5.000000e-01 : f32
      %24 = vector.broadcast %cst_20 : f32 to vector<1x128xf32>
      %25 = arith.mulf %24, %23 : vector<1x128xf32>
      %26 = math.exp %25 : vector<1x128xf32>
      %27 = arith.mulf %22, %26 : vector<1x128xf32>
      %28 = arith.addf %21, %27 : vector<1x128xf32>
      %c0_21 = arith.constant 0 : index
      %c0_22 = arith.constant 0 : index
      %29 = vector.load %arg10[%c0_21, %c0_22] : memref<8x128xf32, #tpu.memory_space<vmem>>, vector<8x128xf32>
      %30 = vector.broadcast %28 : vector<1x128xf32> to vector<8x128xf32>
      %31 = arith.addf %29, %30 : vector<8x128xf32>
      %c0_23 = arith.constant 0 : index
      %c0_24 = arith.constant 0 : index
      %32 = vector.load %arg9[%c0_23, %c0_24] : memref<8x128xf32, #tpu.memory_space<vmem>>, vector<8x128xf32>
      tpu.vector_store %arg9[%c0_23, %c0_24], %31 {strides = array<i32>} : memref<8x128xf32, #tpu.memory_space<vmem>>, vector<8x128xf32>,
    } else {
    }
    return
  }
  func.func @transform_0(%arg0: i32, %arg1: i32) -> (i32, i32) {
    %c0_i32 = arith.constant 0 : i32
    %c0_i32_0 = arith.constant 0 : i32
    return %c0_i32, %arg1 : i32, i32
  }
  func.func @transform_1(%arg0: i32, %arg1: i32) -> (i32, i32) {
    %c0_i32 = arith.constant 0 : i32
    return %arg1, %arg0 : i32, i32
  }
  func.func @transform_2(%arg0: i32, %arg1: i32) -> (i32, i32) {
    %c0_i32 = arith.constant 0 : i32
    return %arg1, %arg0 : i32, i32
  }
  func.func @transform_3(%arg0: i32, %arg1: i32) -> (i32, i32) {
    %c0_i32 = arith.constant 0 : i32
    return %arg1, %arg0 : i32, i32
  }
  func.func @transform_4(%arg0: i32, %arg1: i32) -> (i32, i32) {
    %c0_i32 = arith.constant 0 : i32
    %c0_i32_0 = arith.constant 0 : i32
    return %c0_i32, %arg0 : i32, i32
  }
  func.func @transform_5(%arg0: i32, %arg1: i32) -> (i32, i32) {
    %c0_i32 = arith.constant 0 : i32
    %c0_i32_0 = arith.constant 0 : i32
    return %c0_i32, %arg0 : i32, i32
  }
  func.func @transform_6(%arg0: i32, %arg1: i32) -> (i32, i32) {
    %c0_i32 = arith.constant 0 : i32
    %c0_i32_0 = arith.constant 0 : i32
    return %c0_i32, %arg0 : i32, i32
  }
  func.func @transform_7(%arg0: i32, %arg1: i32) -> (i32, i32) {
    %c0_i32 = arith.constant 0 : i32
    %c0_i32_0 = arith.constant 0 : i32
    return %c0_i32, %arg0 : i32, i32
  }
}

</mosaic_0001>

<llo_original>
// kernel: tpu_custom_call.1
$region0: #{tpu_custom_call.1}
  #allocation0 [shape = 'u32[]', space=smem, size = 0x4, offset = 0x4, fixed_abs, tag = 'smem constant byte address 0x4 - core index']
  #allocation1 [shape = 'u32[72,128]{1,0:T(1,128)}', space=vmem, size = 0x9000, scoped, tag = 'internal scratch']
  #allocation2 [shape = 'f32[8,128]{1,0:T(8,128)}', space=vmem, size = 0x1000, scoped, tag = 'scratch operand']
  %s0 = inlined_call_operand.hbm [shape: f32[8,256], index: 0, kind: input, shape index: {}]
  %s1 = inlined_call_operand.hbm [shape: f32[256,256], index: 1, kind: input, shape index: {}]
  %s2 = inlined_call_operand.hbm [shape: f32[256,256], index: 2, kind: input, shape index: {}]
  %s3 = inlined_call_operand.hbm [shape: f32[256,256], index: 3, kind: input, shape index: {}]
  %s4 = inlined_call_operand.vmem [shape: f32[1,256], index: 4, kind: input, shape index: {}]
  %s5 = inlined_call_operand.vmem [shape: f32[1,256], index: 5, kind: input, shape index: {}]
  %s6 = inlined_call_operand.hbm [shape: f32[1,256], index: 6, kind: input, shape index: {}]
  %s7 = inlined_call_operand.hbm [shape: f32[8,256], index: 7, kind: output, shape index: {}]
  %s8 = sld [smem:[#allocation0]]
  $region89: #{tpu_custom_call.1} parent=0
    _
  %s10 = ssub.s32 1, %s8
  %s11 = scalar_select 0, %s10, %s8
  $region1: #{tpu_custom_call.1} parent=0
    #allocation3 [shape = 'u8[8192]{0}', space=vmem, size = 0x2000, scoped, tag = 'input window, operand 0']
    #allocation4 [shape = 's32[2]{0}', space=sflag, size = 0x8, scoped, tag = 'scoped memory for tpu_custom_call.1']
    #allocation5 [shape = 's32[2]{0}', space=sflag, size = 0x8, scoped, tag = 'scoped memory for tpu_custom_call.1']
    #allocation6 [shape = 'u8[131072]{0}', space=vmem, size = 0x20000, scoped, tag = 'input window, operand 1']
    #allocation7 [shape = 's32[2]{0}', space=sflag, size = 0x8, scoped, tag = 'scoped memory for tpu_custom_call.1']
    #allocation8 [shape = 'u8[131072]{0}', space=vmem, size = 0x20000, scoped, tag = 'input window, operand 2']
    #allocation9 [shape = 'u8[131072]{0}', space=vmem, size = 0x20000, scoped, tag = 'input window, operand 3']
    #allocation10 [shape = 's32[2]{0}', space=sflag, size = 0x8, scoped, tag = 'scoped memory for tpu_custom_call.1']
    #allocation11 [shape = 'u8[1024]{0}', space=vmem, size = 0x400, scoped, tag = 'input window, operand 6']
    #allocation12 [shape = 'u8[8192]{0}', space=vmem, size = 0x2000, scoped, tag = 'output window, operand 0']
    %12 = vsyncpa [#allocation4], 0
    %s13 = scalar_lea.sflag [#allocation4], 1
    %14 = vsyncpa %s13, 0
    %15 = vsyncpa [#allocation7], 0
    %s16 = scalar_lea.sflag [#allocation7], 1
    %17 = vsyncpa %s16, 0
    %18 = vsyncpa [#allocation10], 0
    %s19 = scalar_lea.sflag [#allocation10], 1
    %20 = vsyncpa %s19, 0
    %21 = vsyncpa [#allocation5], 0
    %s22 = scalar_lea.sflag [#allocation5], 1
    %23 = vsyncpa %s22, 0
    loop: start=0, step=1, limit=6
    $region2: #{tpu_custom_call.1} parent=1 // loop_pre_header
      _
    $region3: #{tpu_custom_call.1} parent=1 // loop_header
      %s25 = sphi 0, %s29
      %p26 = scmp.ge.s32.totalorder %s25, 6
      %s32 = sphi 0, %s44
      %s33 = sphi 0, %s40
      %s34 = sphi 0, %s32
      %s35 = sphi 0, %s33
      %s36 = sphi 0, %s34
      %s37 = sphi 0, %s35
      %s47 = sphi 0, %s49
      %s50 = sphi 0, %s47
      %s51 = sphi 0, %s50
      %s67 = sphi 0, %s51
      %s75 = sphi 0, %s77
      %s78 = sphi 0, %s75
      %s79 = sphi 0, %s78
      %s95 = sphi 0, %s79
      %s103 = sphi 0, %s105
      %s106 = sphi 0, %s103
      %s107 = sphi 0, %s106
      %s123 = sphi 0, %s107
      %s131 = sphi 0, %s133
      %s134 = sphi 0, %s131
      %s135 = sphi 0, %s134
      %s151 = sphi 0, %s135
      %s157 = sphi 0, %s159
      %s160 = sphi 0, %s157
      %s161 = sphi 0, %s160
      %s177 = sphi 0, %s161
      %s183 = sphi 0, %s185
      %s186 = sphi 0, %s183
      %s187 = sphi 0, %s186
      %s203 = sphi 0, %s187
      %s209 = sphi 0, %s211
      %s212 = sphi 0, %s209
      %s213 = sphi 0, %s212
      %s229 = sphi 0, %s213
      %s235 = sphi 0, %s237
      %s238 = sphi 0, %s235
      %s239 = sphi 0, %s238
      %s255 = sphi 0, %s239
    $region4: #{tpu_custom_call.1} parent=1 // loop_header_branch
      %28 = sbr.rel (%p26) target = $region8
    $region5: #{tpu_custom_call.1} parent=1 // loop_body
      %s30 = ssub.s32 %s25, 1
      %s31 = ssub.s32 %s25, 2
      %s38 = sadd.s32 1, %s33
      %p39 = scmp.ge.s32.totalorder %s38, 2
      %s40 = scalar_select %p39, 0, %s38
      %s41 = sadd.s32 1, %s32
      %s42 = scalar_select %p39, %s41, %s32
      %p43 = scmp.ge.s32.totalorder %s42, 2
      %s44 = scalar_select %p43, 0, %s42
      %s45 = ssub.s32 %s33, %s40
      %p46 = scmp.eq.s32.totalorder %s45, 0
      %s48 = sadd.s32 %s47, 1
      %s49 = scalar_select %p46, %s47, %s48
      %p52 = pneg %p46
      %p53 = scmp.eq.s32.totalorder %s25, 3
      %p54 = por %p52, %p53
      %p55 = scmp.ne.s32.totalorder %s47, %s50
      %p56 = scmp.eq.s32.totalorder %s25, 0
      %p57 = por %p55, %p56
      %p58 = scmp.ne.s32.totalorder %s47, %s50
      %p59 = scmp.eq.s32.totalorder %s30, 3
      %p60 = por %p58, %p59
      %p61 = scmp.ne.s32.totalorder %s50, %s51
      %p62 = scmp.eq.s32.totalorder %s30, 0
      %p63 = por %p61, %p62
      %p64 = scmp.ne.s32.totalorder %s50, %s51
      %p65 = scmp.eq.s32.totalorder %s31, 3
      %p66 = por %p64, %p65
      %p68 = scmp.ne.s32.totalorder %s51, %s67
      %p69 = scmp.eq.s32.totalorder %s31, 0
      %p70 = por %p68, %p69
      %s71 = ssub.s32 %s33, %s40
      %s72 = ssub.s32 %s32, %s44
      %s73 = sor.u32 %s71, %s72
      %p74 = scmp.eq.s32.totalorder %s73, 0
      %s76 = sadd.s32 %s75, 1
      %s77 = scalar_select %p74, %s75, %s76
      %p80 = pneg %p74
      %p81 = scmp.eq.s32.totalorder %s25, 3
      %p82 = por %p80, %p81
      %p83 = scmp.ne.s32.totalorder %s75, %s78
      %p84 = scmp.eq.s32.totalorder %s25, 0
      %p85 = por %p83, %p84
      %p86 = scmp.ne.s32.totalorder %s75, %s78
      %p87 = scmp.eq.s32.totalorder %s30, 3
      %p88 = por %p86, %p87
      %p89 = scmp.ne.s32.totalorder %s78, %s79
      %p90 = scmp.eq.s32.totalorder %s30, 0
      %p91 = por %p89, %p90
      %p92 = scmp.ne.s32.totalorder %s78, %s79
      %p93 = scmp.eq.s32.totalorder %s31, 3
      %p94 = por %p92, %p93
      %p96 = scmp.ne.s32.totalorder %s79, %s95
      %p97 = scmp.eq.s32.totalorder %s31, 0
      %p98 = por %p96, %p97
      %s99 = ssub.s32 %s33, %s40
      %s100 = ssub.s32 %s32, %s44
      %s101 = sor.u32 %s99, %s100
      %p102 = scmp.eq.s32.totalorder %s101, 0
      %s104 = sadd.s32 %s103, 1
      %s105 = scalar_select %p102, %s103, %s104
      %p108 = pneg %p102
      %p109 = scmp.eq.s32.totalorder %s25, 3
      %p110 = por %p108, %p109
      %p111 = scmp.ne.s32.totalorder %s103, %s106
      %p112 = scmp.eq.s32.totalorder %s25, 0
      %p113 = por %p111, %p112
      %p114 = scmp.ne.s32.totalorder %s103, %s106
      %p115 = scmp.eq.s32.totalorder %s30, 3
      %p116 = por %p114, %p115
      %p117 = scmp.ne.s32.totalorder %s106, %s107
      %p118 = scmp.eq.s32.totalorder %s30, 0
      %p119 = por %p117, %p118
      %p120 = scmp.ne.s32.totalorder %s106, %s107
      %p121 = scmp.eq.s32.totalorder %s31, 3
      %p122 = por %p120, %p121
      %p124 = scmp.ne.s32.totalorder %s107, %s123
      %p125 = scmp.eq.s32.totalorder %s31, 0
      %p126 = por %p124, %p125
      %s127 = ssub.s32 %s33, %s40
      %s128 = ssub.s32 %s32, %s44
      %s129 = sor.u32 %s127, %s128
      %p130 = scmp.eq.s32.totalorder %s129, 0
      %s132 = sadd.s32 %s131, 1
      %s133 = scalar_select %p130, %s131, %s132
      %p136 = pneg %p130
      %p137 = scmp.eq.s32.totalorder %s25, 3
      %p138 = por %p136, %p137
      %p139 = scmp.ne.s32.totalorder %s131, %s134
      %p140 = scmp.eq.s32.totalorder %s25, 0
      %p141 = por %p139, %p140
      %p142 = scmp.ne.s32.totalorder %s131, %s134
      %p143 = scmp.eq.s32.totalorder %s30, 3
      %p144 = por %p142, %p143
      %p145 = scmp.ne.s32.totalorder %s134, %s135
      %p146 = scmp.eq.s32.totalorder %s30, 0
      %p147 = por %p145, %p146
      %p148 = scmp.ne.s32.totalorder %s134, %s135
      %p149 = scmp.eq.s32.totalorder %s31, 3
      %p150 = por %p148, %p149
      %p152 = scmp.ne.s32.totalorder %s135, %s151
      %p153 = scmp.eq.s32.totalorder %s31, 0
      %p154 = por %p152, %p153
      %s155 = ssub.s32 %s32, %s44
      %p156 = scmp.eq.s32.totalorder %s155, 0
      %s158 = sadd.s32 %s157, 1
      %s159 = scalar_select %p156, %s157, %s158
      %p162 = pneg %p156
      %p163 = scmp.eq.s32.totalorder %s25, 3
      %p164 = por %p162, %p163
      %p165 = scmp.ne.s32.totalorder %s157, %s160
      %p166 = scmp.eq.s32.totalorder %s25, 0
      %p167 = por %p165, %p166
      %p168 = scmp.ne.s32.totalorder %s157, %s160
      %p169 = scmp.eq.s32.totalorder %s30, 3
      %p170 = por %p168, %p169
      %p171 = scmp.ne.s32.totalorder %s160, %s161
      %p172 = scmp.eq.s32.totalorder %s30, 0
      %p173 = por %p171, %p172
      %p174 = scmp.ne.s32.totalorder %s160, %s161
      %p175 = scmp.eq.s32.totalorder %s31, 3
      %p176 = por %p174, %p175
      %p178 = scmp.ne.s32.totalorder %s161, %s177
      %p179 = scmp.eq.s32.totalorder %s31, 0
      %p180 = por %p178, %p179
      %s181 = ssub.s32 %s32, %s44
      %p182 = scmp.eq.s32.totalorder %s181, 0
      %s184 = sadd.s32 %s183, 1
      %s185 = scalar_select %p182, %s183, %s184
      %p188 = pneg %p182
      %p189 = scmp.eq.s32.totalorder %s25, 3
      %p190 = por %p188, %p189
      %p191 = scmp.ne.s32.totalorder %s183, %s186
      %p192 = scmp.eq.s32.totalorder %s25, 0
      %p193 = por %p191, %p192
      %p194 = scmp.ne.s32.totalorder %s183, %s186
      %p195 = scmp.eq.s32.totalorder %s30, 3
      %p196 = por %p194, %p195
      %p197 = scmp.ne.s32.totalorder %s186, %s187
      %p198 = scmp.eq.s32.totalorder %s30, 0
      %p199 = por %p197, %p198
      %p200 = scmp.ne.s32.totalorder %s186, %s187
      %p201 = scmp.eq.s32.totalorder %s31, 3
      %p202 = por %p200, %p201
      %p204 = scmp.ne.s32.totalorder %s187, %s203
      %p205 = scmp.eq.s32.totalorder %s31, 0
      %p206 = por %p204, %p205
      %s207 = ssub.s32 %s32, %s44
      %p208 = scmp.eq.s32.totalorder %s207, 0
      %s210 = sadd.s32 %s209, 1
      %s211 = scalar_select %p208, %s209, %s210
      %p214 = pneg %p208
      %p215 = scmp.eq.s32.totalorder %s25, 3
      %p216 = por %p214, %p215
      %p217 = scmp.ne.s32.totalorder %s209, %s212
      %p218 = scmp.eq.s32.totalorder %s25, 0
      %p219 = por %p217, %p218
      %p220 = scmp.ne.s32.totalorder %s209, %s212
      %p221 = scmp.eq.s32.totalorder %s30, 3
      %p222 = por %p220, %p221
      %p223 = scmp.ne.s32.totalorder %s212, %s213
      %p224 = scmp.eq.s32.totalorder %s30, 0
      %p225 = por %p223, %p224
      %p226 = scmp.ne.s32.totalorder %s212, %s213
      %p227 = scmp.eq.s32.totalorder %s31, 3
      %p228 = por %p226, %p227
      %p230 = scmp.ne.s32.totalorder %s213, %s229
      %p231 = scmp.eq.s32.totalorder %s31, 0
      %p232 = por %p230, %p231
      %s233 = ssub.s32 %s32, %s44
      %p234 = scmp.eq.s32.totalorder %s233, 0
      %s236 = sadd.s32 %s235, 1
      %s237 = scalar_select %p234, %s235, %s236
      %p240 = pneg %p234
      %p241 = scmp.eq.s32.totalorder %s25, 3
      %p242 = por %p240, %p241
      %p243 = scmp.ne.s32.totalorder %s235, %s238
      %p244 = scmp.eq.s32.totalorder %s25, 0
      %p245 = por %p243, %p244
      %p246 = scmp.ne.s32.totalorder %s235, %s238
      %p247 = scmp.eq.s32.totalorder %s30, 3
      %p248 = por %p246, %p247
      %p249 = scmp.ne.s32.totalorder %s238, %s239
      %p250 = scmp.eq.s32.totalorder %s30, 0
      %p251 = por %p249, %p250
      %p252 = scmp.ne.s32.totalorder %s238, %s239
      %p253 = scmp.eq.s32.totalorder %s31, 3
      %p254 = por %p252, %p253
      %p256 = scmp.ne.s32.totalorder %s239, %s255
      %p257 = scmp.eq.s32.totalorder %s31, 0
      %p258 = por %p256, %p257
      %p259 = scmp.le.s32.totalorder 1, %s25
      %p260 = scmp.lt.s32.totalorder %s25, 5
      %p261 = pnand %p259, %p260
      %p262 = pneg %p261
      // Predicated region
      $region9: #{tpu_custom_call.1} parent=5 // pred_check
        _
      $region10: #{tpu_custom_call.1} parent=5 // pred_check_branch
        %264 = sbr.rel (%p261) target = $region12
      $region11: #{tpu_custom_call.1} parent=5 // pred_region
        %s265 = ssub.s32 %s25, 1
      $region12: #{tpu_custom_call.1} parent=5 // pred_fallthru
        _
      %p266 = scmp.lt.s32.totalorder %s25, 4
      // Predicated region
      $region13: #{tpu_custom_call.1} parent=5 // pred_check
        %p267 = pneg %p266
      $region14: #{tpu_custom_call.1} parent=5 // pred_check_branch
        %269 = sbr.rel (%p267) target = $region16
      $region15: #{tpu_custom_call.1} parent=5 // pred_region
        // Predicated region
        $region17: #{tpu_custom_call.1} parent=15 // pred_check
          %p270 = pneg %p57
        $region18: #{tpu_custom_call.1} parent=15 // pred_check_branch
          %272 = sbr.rel (%p270) target = $region20
        $region19: #{tpu_custom_call.1} parent=15 // pred_region
          %s273 = sand.u32 %s47, 1
          %s274 = scalar_lea.sflag [#allocation4], %s273
          %s275 = sand.u32 %s47, 1
          %s276 = smul.addr %s275, 8
          %s277 = scalar_lea.vmem [#allocation3], %s276
          %279 = vsyncadd %s274, 0
          %s280 = smul.addr %s33, 8
          %s281 = scalar_lea.hbm %s0, %s280
          %s283 = sshll.u32 %s281, 4
          %s284 = int_to_ptr.hbm [resolvable:$true] %s283
          %s285 = sshll.u32 %s277, 4
          %s286 = int_to_ptr.vmem [resolvable:$true] %s285
          %288 = dma.hbm_to_vmem [thread:$0]  %s284, 128, %s286, %s274
        $region20: #{tpu_custom_call.1} parent=15 // pred_fallthru
          _
        // Predicated region
        $region21: #{tpu_custom_call.1} parent=15 // pred_check
          %p289 = pneg %p85
        $region22: #{tpu_custom_call.1} parent=15 // pred_check_branch
          %291 = sbr.rel (%p289) target = $region24
        $region23: #{tpu_custom_call.1} parent=15 // pred_region
          %s292 = sand.u32 %s25, 1
          %s293 = scalar_lea.sflag [#allocation7], %s292
          %s294 = sand.u32 %s75, 1
          %s295 = smul.addr %s294, 128
          %s296 = scalar_lea.vmem [#allocation6], %s295
          %s297 = smul.u32 16, %s33
          %299 = vsyncadd %s293, 0
          %s300 = smul.addr %s297, 2
          %s301 = sadd.s32 %s32, %s300
          %s302 = smul.addr %s301, 8
          %s303 = scalar_lea.hbm %s1, %s302
          %s304 = sshll.u32 %s303, 4
          %s305 = int_to_ptr.hbm [resolvable:$true] %s304
          %s306 = sshll.u32 %s296, 4
          %s307 = int_to_ptr.vmem [resolvable:$true] %s306
          %312 = dma.hbm_to_vmem [thread:$0]  %s305, 2048, %s307, %s293, 256, 128, 8
        $region24: #{tpu_custom_call.1} parent=15 // pred_fallthru
          _
        // Predicated region
        $region25: #{tpu_custom_call.1} parent=15 // pred_check
          %p313 = pneg %p113
        $region26: #{tpu_custom_call.1} parent=15 // pred_check_branch
          %315 = sbr.rel (%p313) target = $region28
        $region27: #{tpu_custom_call.1} parent=15 // pred_region
          %s316 = sand.u32 %s25, 1
          %s317 = scalar_lea.sflag [#allocation7], %s316
          %s318 = sand.u32 %s103, 1
          %s319 = smul.addr %s318, 128
          %s320 = scalar_lea.vmem [#allocation8], %s319
          %s321 = smul.u32 16, %s33
          %323 = vsyncadd %s317, 0
          %s324 = smul.addr %s321, 2
          %s325 = sadd.s32 %s32, %s324
          %s326 = smul.addr %s325, 8
          %s327 = scalar_lea.hbm %s2, %s326
          %s328 = sshll.u32 %s327, 4
          %s329 = int_to_ptr.hbm [resolvable:$true] %s328
          %s330 = sshll.u32 %s320, 4
          %s331 = int_to_ptr.vmem [resolvable:$true] %s330
          %336 = dma.hbm_to_vmem [thread:$0]  %s329, 2048, %s331, %s317, 256, 128, 8
        $region28: #{tpu_custom_call.1} parent=15 // pred_fallthru
          _
        // Predicated region
        $region29: #{tpu_custom_call.1} parent=15 // pred_check
          %p337 = pneg %p141
        $region30: #{tpu_custom_call.1} parent=15 // pred_check_branch
          %339 = sbr.rel (%p337) target = $region32
        $region31: #{tpu_custom_call.1} parent=15 // pred_region
          %s340 = sand.u32 %s25, 1
          %s341 = scalar_lea.sflag [#allocation10], %s340
          %s342 = sand.u32 %s131, 1
          %s343 = smul.addr %s342, 128
          %s344 = scalar_lea.vmem [#allocation9], %s343
          %s345 = smul.u32 16, %s33
          %347 = vsyncadd %s341, 0
          %s348 = smul.addr %s345, 2
          %s349 = sadd.s32 %s32, %s348
          %s350 = smul.addr %s349, 8
          %s351 = scalar_lea.hbm %s3, %s350
          %s352 = sshll.u32 %s351, 4
          %s353 = int_to_ptr.hbm [resolvable:$true] %s352
          %s354 = sshll.u32 %s344, 4
          %s355 = int_to_ptr.vmem [resolvable:$true] %s354
          %360 = dma.hbm_to_vmem [thread:$0]  %s353, 2048, %s355, %s341, 256, 128, 8
        $region32: #{tpu_custom_call.1} parent=15 // pred_fallthru
          _
        // Predicated region
        $region33: #{tpu_custom_call.1} parent=15 // pred_check
          %p361 = pneg %p167
        $region34: #{tpu_custom_call.1} parent=15 // pred_check_branch
          %363 = sbr.rel (%p361) target = $region36
        $region35: #{tpu_custom_call.1} parent=15 // pred_region
          %p364 = scmp.lt.s32.totalorder %s32, 1
          %s365 = scalar_select %p364, %s32, 1
          %s366 = scalar_lea.vmem %s4, %s365
        $region36: #{tpu_custom_call.1} parent=15 // pred_fallthru
          _
        // Predicated region
        $region37: #{tpu_custom_call.1} parent=15 // pred_check
          %p367 = pneg %p193
        $region38: #{tpu_custom_call.1} parent=15 // pred_check_branch
          %369 = sbr.rel (%p367) target = $region40
        $region39: #{tpu_custom_call.1} parent=15 // pred_region
          %p370 = scmp.lt.s32.totalorder %s32, 1
          %s371 = scalar_select %p370, %s32, 1
          %s372 = scalar_lea.vmem %s5, %s371
        $region40: #{tpu_custom_call.1} parent=15 // pred_fallthru
          _
        // Predicated region
        $region41: #{tpu_custom_call.1} parent=15 // pred_check
          %p373 = pneg %p219
        $region42: #{tpu_custom_call.1} parent=15 // pred_check_branch
          %375 = sbr.rel (%p373) target = $region44
        $region43: #{tpu_custom_call.1} parent=15 // pred_region
          %s376 = sand.u32 %s25, 1
          %s377 = scalar_lea.sflag [#allocation10], %s376
          %s378 = sand.u32 %s209, 1
          %s379 = scalar_lea.vmem [#allocation11], %s378
          %381 = vsyncadd %s377, 0
          %s382 = scalar_lea.hbm %s6, %s32
          %s384 = sshll.u32 %s382, 4
          %s385 = int_to_ptr.hbm [resolvable:$true] %s384
          %s386 = sshll.u32 %s379, 4
          %s387 = int_to_ptr.vmem [resolvable:$true] %s386
          %389 = dma.hbm_to_vmem [thread:$0]  %s385, 16, %s387, %s377
        $region44: #{tpu_custom_call.1} parent=15 // pred_fallthru
          _
      $region16: #{tpu_custom_call.1} parent=5 // pred_fallthru
        _
      %p390 = scmp.le.s32.totalorder 1, %s25
      %p391 = scmp.lt.s32.totalorder %s25, 5
      %p392 = pnand %p390, %p391
      %p393 = pneg %p392
      // Predicated region
      $region45: #{tpu_custom_call.1} parent=5 // pred_check
        _
      $region46: #{tpu_custom_call.1} parent=5 // pred_check_branch
        %395 = sbr.rel (%p392) target = $region48
      $region47: #{tpu_custom_call.1} parent=5 // pred_region
        %s396 = ssub.s32 %s25, 1
        %s397 = sand.u32 %s50, 1
        %s398 = scalar_lea.sflag [#allocation4], %s397
        %s399 = sand.u32 %s50, 1
        %s400 = smul.addr %s399, 8
        %s401 = scalar_lea.vmem [#allocation3], %s400
        // Predicated region
        $region49: #{tpu_custom_call.1} parent=47 // pred_check
          %p402 = pneg %p63
        $region50: #{tpu_custom_call.1} parent=47 // pred_check_branch
          %404 = sbr.rel (%p402) target = $region52
        $region51: #{tpu_custom_call.1} parent=47 // pred_region
          %406 = dma.done %s398, 128
        $region52: #{tpu_custom_call.1} parent=47 // pred_fallthru
          _
        %s407 = sand.u32 %s30, 1
        %s408 = scalar_lea.sflag [#allocation7], %s407
        %s409 = sand.u32 %s78, 1
        %s410 = smul.addr %s409, 128
        %s411 = scalar_lea.vmem [#allocation6], %s410
        // Predicated region
        $region53: #{tpu_custom_call.1} parent=47 // pred_check
          %p412 = pneg %p91
        $region54: #{tpu_custom_call.1} parent=47 // pred_check_branch
          %414 = sbr.rel (%p412) target = $region56
        $region55: #{tpu_custom_call.1} parent=47 // pred_region
          %416 = dma.done %s408, 2048
        $region56: #{tpu_custom_call.1} parent=47 // pred_fallthru
          _
        %s417 = sand.u32 %s30, 1
        %s418 = scalar_lea.sflag [#allocation7], %s417
        %s419 = sand.u32 %s106, 1
        %s420 = smul.addr %s419, 128
        %s421 = scalar_lea.vmem [#allocation8], %s420
        // Predicated region
        $region57: #{tpu_custom_call.1} parent=47 // pred_check
          %p422 = pneg %p119
        $region58: #{tpu_custom_call.1} parent=47 // pred_check_branch
          %424 = sbr.rel (%p422) target = $region60
        $region59: #{tpu_custom_call.1} parent=47 // pred_region
          %426 = dma.done %s418, 2048
        $region60: #{tpu_custom_call.1} parent=47 // pred_fallthru
          _
        %s427 = sand.u32 %s30, 1
        %s428 = scalar_lea.sflag [#allocation10], %s427
        %s429 = sand.u32 %s134, 1
        %s430 = smul.addr %s429, 128
        %s431 = scalar_lea.vmem [#allocation9], %s430
        // Predicated region
        $region61: #{tpu_custom_call.1} parent=47 // pred_check
          %p432 = pneg %p147
        $region62: #{tpu_custom_call.1} parent=47 // pred_check_branch
          %434 = sbr.rel (%p432) target = $region64
        $region63: #{tpu_custom_call.1} parent=47 // pred_region
          %436 = dma.done %s428, 2048
        $region64: #{tpu_custom_call.1} parent=47 // pred_fallthru
          _
        %s437 = sand.u32 %s30, 1
        %s438 = scalar_lea.sflag [#allocation10], %s437
        %s439 = sand.u32 %s212, 1
        %s440 = scalar_lea.vmem [#allocation11], %s439
        // Predicated region
        $region65: #{tpu_custom_call.1} parent=47 // pred_check
          %p441 = pneg %p225
        $region66: #{tpu_custom_call.1} parent=47 // pred_check_branch
          %443 = sbr.rel (%p441) target = $region68
        $region67: #{tpu_custom_call.1} parent=47 // pred_region
          %445 = dma.done %s438, 16
        $region68: #{tpu_custom_call.1} parent=47 // pred_fallthru
          _
        %s446 = sand.u32 %s50, 1
        %s447 = scalar_lea.sflag [#allocation4], %s446
        %s448 = sand.u32 %s50, 1
        %s449 = smul.addr %s448, 8
        %s450 = scalar_lea.vmem [#allocation3], %s449
        %p451 = pneg %p63
        %p452 = pneg %p60
        %s453 = sand.u32 %s30, 1
        %s454 = scalar_lea.sflag [#allocation7], %s453
        %s455 = sand.u32 %s78, 1
        %s456 = smul.addr %s455, 128
        %s457 = scalar_lea.vmem [#allocation6], %s456
        %p458 = pneg %p91
        %p459 = pneg %p88
        %s460 = sand.u32 %s30, 1
        %s461 = scalar_lea.sflag [#allocation7], %s460
        %s462 = sand.u32 %s106, 1
        %s463 = smul.addr %s462, 128
        %s464 = scalar_lea.vmem [#allocation8], %s463
        %p465 = pneg %p119
        %p466 = pneg %p116
        %s467 = sand.u32 %s30, 1
        %s468 = scalar_lea.sflag [#allocation10], %s467
        %s469 = sand.u32 %s134, 1
        %s470 = smul.addr %s469, 128
        %s471 = scalar_lea.vmem [#allocation9], %s470
        %p472 = pneg %p147
        %p473 = pneg %p144
        %p474 = scmp.lt.s32.totalorder %s34, 1
        %s475 = scalar_select %p474, %s34, 1
        %s476 = scalar_lea.vmem %s4, %s475
        %p477 = pneg %p173
        %p478 = pneg %p170
        %p479 = scmp.lt.s32.totalorder %s34, 1
        %s480 = scalar_select %p479, %s34, 1
        %s481 = scalar_lea.vmem %s5, %s480
        %p482 = pneg %p199
        %p483 = pneg %p196
        %s484 = sand.u32 %s30, 1
        %s485 = scalar_lea.sflag [#allocation10], %s484
        %s486 = sand.u32 %s212, 1
        %s487 = scalar_lea.vmem [#allocation11], %s486
        %p488 = pneg %p225
        %p489 = pneg %p222
        %p490 = pneg %p251
        %p491 = pneg %p248
        %s492 = sand.u32 %s238, 1
        %s493 = scalar_lea.sflag [#allocation5], %s492
        %s494 = sand.u32 %s238, 1
        %s495 = smul.addr %s494, 8
        %s496 = scalar_lea.vmem [#allocation12], %s495
        %s497 = smul.u32 16, %s35
        %s498 = smul.u32 16, %s35
        %s499 = smul.u32 16, %s35
        %p500 = scmp.lt.s32.totalorder %s34, 1
        %s501 = scalar_select %p500, %s34, 1
        %s502 = scalar_lea.vmem %s4, %s501
        %p503 = scmp.lt.s32.totalorder %s34, 1
        %s504 = scalar_select %p503, %s34, 1
        %s505 = scalar_lea.vmem %s5, %s504
        %p506 = scmp.eq.s32.totalorder %s35, 0
        // Predicated region
        $region69: #{tpu_custom_call.1} parent=47 // pred_check
          %p507 = pneg %p506
        $region70: #{tpu_custom_call.1} parent=47 // pred_check_branch
          %509 = sbr.rel (%p507) target = $region72
        $region71: #{tpu_custom_call.1} parent=47 // pred_region
          %510 = vst [vmem:[#allocation2] sm:$0xff] 0.0
        $region72: #{tpu_custom_call.1} parent=47 // pred_fallthru
          _
        %v511 = vld [vmem:[%s411] sm:$0xff]
        %v512 = vld [vmem:[%s411 + $0x8] sm:$0xff]
        %v513 = vld [vmem:[%s411 + $0x10] sm:$0xff]
        %v514 = vld [vmem:[%s411 + $0x18] sm:$0xff]
        %v515 = vld [vmem:[%s411 + $0x20] sm:$0xff]
        %v516 = vld [vmem:[%s411 + $0x28] sm:$0xff]
        %v517 = vld [vmem:[%s411 + $0x30] sm:$0xff]
        %v518 = vld [vmem:[%s411 + $0x38] sm:$0xff]
        %v519 = vld [vmem:[%s411 + $0x40] sm:$0xff]
        %v520 = vld [vmem:[%s411 + $0x48] sm:$0xff]
        %v521 = vld [vmem:[%s411 + $0x50] sm:$0xff]
        %v522 = vld [vmem:[%s411 + $0x58] sm:$0xff]
        %v523 = vld [vmem:[%s411 + $0x60] sm:$0xff]
        %v524 = vld [vmem:[%s411 + $0x68] sm:$0xff]
        %v525 = vld [vmem:[%s411 + $0x70] sm:$0xff]
        %v526 = vld [vmem:[%s411 + $0x78] sm:$0xff]
        %v527 = vld [vmem:[%s431] sm:$0xff]
        %v528 = vld [vmem:[%s431 + $0x8] sm:$0xff]
        %v529 = vld [vmem:[%s431 + $0x10] sm:$0xff]
        %v530 = vld [vmem:[%s431 + $0x18] sm:$0xff]
        %v531 = vld [vmem:[%s431 + $0x20] sm:$0xff]
        %v532 = vld [vmem:[%s431 + $0x28] sm:$0xff]
        %v533 = vld [vmem:[%s431 + $0x30] sm:$0xff]
        %v534 = vld [vmem:[%s431 + $0x38] sm:$0xff]
        %v535 = vld [vmem:[%s431 + $0x40] sm:$0xff]
        %v536 = vld [vmem:[%s431 + $0x48] sm:$0xff]
        %v537 = vld [vmem:[%s431 + $0x50] sm:$0xff]
        %v538 = vld [vmem:[%s431 + $0x58] sm:$0xff]
        %v539 = vld [vmem:[%s431 + $0x60] sm:$0xff]
        %v540 = vld [vmem:[%s431 + $0x68] sm:$0xff]
        %v541 = vld [vmem:[%s431 + $0x70] sm:$0xff]
        %v542 = vld [vmem:[%s431 + $0x78] sm:$0xff]
        %v543 = vld [vmem:[%s421] sm:$0xff]
        %v544 = vld [vmem:[%s421 + $0x8] sm:$0xff]
        %v545 = vld [vmem:[%s421 + $0x10] sm:$0xff]
        %v546 = vld [vmem:[%s421 + $0x18] sm:$0xff]
        %v547 = vld [vmem:[%s421 + $0x20] sm:$0xff]
        %v548 = vld [vmem:[%s421 + $0x28] sm:$0xff]
        %v549 = vld [vmem:[%s421 + $0x30] sm:$0xff]
        %v550 = vld [vmem:[%s421 + $0x38] sm:$0xff]
        %v551 = vld [vmem:[%s421 + $0x40] sm:$0xff]
        %v552 = vld [vmem:[%s421 + $0x48] sm:$0xff]
        %v553 = vld [vmem:[%s421 + $0x50] sm:$0xff]
        %v554 = vld [vmem:[%s421 + $0x58] sm:$0xff]
        %v555 = vld [vmem:[%s421 + $0x60] sm:$0xff]
        %v556 = vld [vmem:[%s421 + $0x68] sm:$0xff]
        %v557 = vld [vmem:[%s421 + $0x70] sm:$0xff]
        %v558 = vld [vmem:[%s421 + $0x78] sm:$0xff]
        %v559 = vmul.f32 %v543, 0.5
        %v560 = vmul.f32 %v544, 0.5
        %v561 = vmul.f32 %v545, 0.5
        %v562 = vmul.f32 %v546, 0.5
        %v563 = vmul.f32 %v547, 0.5
        %v564 = vmul.f32 %v548, 0.5
        %v565 = vmul.f32 %v549, 0.5
        %v566 = vmul.f32 %v550, 0.5
        %v567 = vmul.f32 %v551, 0.5
        %v568 = vmul.f32 %v552, 0.5
        %v569 = vmul.f32 %v553, 0.5
        %v570 = vmul.f32 %v554, 0.5
        %v571 = vmul.f32 %v555, 0.5
        %v572 = vmul.f32 %v556, 0.5
        %v573 = vmul.f32 %v557, 0.5
        %v574 = vmul.f32 %v558, 0.5
        %v575 = vmul.f32 %v559, 1.442695
        %v576 = vpow.pop %v575
        %v577 = vmul.f32 %v560, 1.442695
        %v578 = vpow.pop %v577
        %v579 = vmul.f32 %v561, 1.442695
        %v580 = vpow.pop %v579
        %v581 = vmul.f32 %v562, 1.442695
        %v582 = vpow.pop %v581
        %v583 = vmul.f32 %v563, 1.442695
        %v584 = vpow.pop %v583
        %v585 = vmul.f32 %v564, 1.442695
        %v586 = vpow.pop %v585
        %v587 = vmul.f32 %v565, 1.442695
        %v588 = vpow.pop %v587
        %v589 = vmul.f32 %v566, 1.442695
        %v590 = vpow.pop %v589
        %v591 = vmul.f32 %v567, 1.442695
        %v592 = vpow.pop %v591
        %v593 = vmul.f32 %v568, 1.442695
        %v594 = vpow.pop %v593
        %v595 = vmul.f32 %v569, 1.442695
        %v596 = vpow.pop %v595
        %v597 = vmul.f32 %v570, 1.442695
        %v598 = vpow.pop %v597
        %v599 = vmul.f32 %v571, 1.442695
        %v600 = vpow.pop %v599
        %v601 = vmul.f32 %v572, 1.442695
        %v602 = vpow.pop %v601
        %v603 = vmul.f32 %v573, 1.442695
        %v604 = vpow.pop %v603
        %v605 = vmul.f32 %v574, 1.442695
        %v606 = vpow.pop %v605
        %v607 = vmul.f32 %v527, %v576
        %v608 = vmul.f32 %v528, %v578
        %v609 = vmul.f32 %v529, %v580
        %v610 = vmul.f32 %v530, %v582
        %v611 = vmul.f32 %v531, %v584
        %v612 = vmul.f32 %v532, %v586
        %v613 = vmul.f32 %v533, %v588
        %v614 = vmul.f32 %v534, %v590
        %v615 = vmul.f32 %v535, %v592
        %v616 = vmul.f32 %v536, %v594
        %v617 = vmul.f32 %v537, %v596
        %v618 = vmul.f32 %v538, %v598
        %v619 = vmul.f32 %v539, %v600
        %v620 = vmul.f32 %v540, %v602
        %v621 = vmul.f32 %v541, %v604
        %v622 = vmul.f32 %v542, %v606
        %v623 = vadd.f32 %v511, %v607
        %v624 = vadd.f32 %v512, %v608
        %v625 = vadd.f32 %v513, %v609
        %v626 = vadd.f32 %v514, %v610
        %v627 = vadd.f32 %v515, %v611
        %v628 = vadd.f32 %v516, %v612
        %v629 = vadd.f32 %v517, %v613
        %v630 = vadd.f32 %v518, %v614
        %v631 = vadd.f32 %v519, %v615
        %v632 = vadd.f32 %v520, %v616
        %v633 = vadd.f32 %v521, %v617
        %v634 = vadd.f32 %v522, %v618
        %v635 = vadd.f32 %v523, %v619
        %v636 = vadd.f32 %v524, %v620
        %v637 = vadd.f32 %v525, %v621
        %v638 = vadd.f32 %v526, %v622
        %v639 = vld [vmem:[#allocation2] sm:$0xff]
        %v640 = vld [vmem:[%s401] sm:$0xff]
        %v641 = vpack.c.bf16 %v640, %v640
        %v642 = vpack.c.bf16 %v624, %v623
        %v643 = vpack.c.bf16 %v626, %v625
        %v644 = vpack.c.bf16 %v628, %v627
        %v645 = vpack.c.bf16 %v630, %v629
        %v646 = vpack.c.bf16 %v632, %v631
        %v647 = vpack.c.bf16 %v634, %v633
        %v648 = vpack.c.bf16 %v636, %v635
        %v649 = vpack.c.bf16 %v638, %v637
        %650 = vmatpush.bf16.msra.mxu0 %v649
        %651 = vmatpush.bf16.msra.mxu0 %v648
        %652 = vmatpush.bf16.msra.mxu0 %v647
        %653 = vmatpush.bf16.msra.mxu0 %v646
        %654 = vmatpush.bf16.msra.mxu0 %v645
        %655 = vmatpush.bf16.msra.mxu0 %v644
        %656 = vmatpush.bf16.msra.mxu0 %v643
        %657 = vmatpush.bf16.msra.mxu0 %v642
        %658 = vmatmul.bf16.gmra.mxu0 %v641
        %v659 = vpop.f32.mrf.mxu0
        %v660 = vadd.f32 0.0, %v659
        %v661 = vpop.f32.mrf.mxu0
        %662 = vdwg.mxu0
        %v663 = vadd.f32 %v639, %v660
        %664 = vst [vmem:[#allocation2] sm:$0xff] %v663
        %p665 = scmp.eq.s32.totalorder %s35, 1
        // Predicated region
        $region73: #{tpu_custom_call.1} parent=47 // pred_check
          %p666 = pneg %p665
        $region74: #{tpu_custom_call.1} parent=47 // pred_check_branch
          %668 = sbr.rel (%p666) target = $region76
        $region75: #{tpu_custom_call.1} parent=47 // pred_region
          %v669 = vld [vmem:[%s502] sm:$0x1]
          %v670 = vld [vmem:[%s440] sm:$0x1]
          %v671 = vld [vmem:[%s505] sm:$0x1]
          %v672 = vmul.f32 %v671, 0.5
          %v673 = vmul.f32 %v672, 1.442695
          %v674 = vpow.pop %v673
          %v675 = vmul.f32 %v670, %v674
          %v676 = vadd.f32 %v669, %v675
          %v677 = vld [vmem:[#allocation2] sm:$0xff]
          %v679 = vperm.slane %v676, 0
          %v681 = vadd.f32 %v677, %v679
          %682 = vst [vmem:[%s496] sm:$0xff] %v681
        $region76: #{tpu_custom_call.1} parent=47 // pred_fallthru
          _
        %s683 = sand.u32 %s238, 1
        %s684 = scalar_lea.sflag [#allocation5], %s683
        %s685 = sand.u32 %s238, 1
        %s686 = smul.addr %s685, 8
        %s687 = scalar_lea.vmem [#allocation12], %s686
        // Predicated region
        $region77: #{tpu_custom_call.1} parent=47 // pred_check
          %p688 = pneg %p248
        $region78: #{tpu_custom_call.1} parent=47 // pred_check_branch
          %690 = sbr.rel (%p688) target = $region80
        $region79: #{tpu_custom_call.1} parent=47 // pred_region
          %692 = vsyncadd %s684, 0
          %s693 = smul.addr %s34, 8
          %s694 = scalar_lea.hbm %s7, %s693
          %s696 = sshll.u32 %s687, 4
          %s697 = int_to_ptr.vmem [resolvable:$true] %s696
          %s698 = sshll.u32 %s694, 4
          %s699 = int_to_ptr.hbm [resolvable:$true] %s698
          %701 = dma.vmem_to_hbm [thread:$0]  %s697, 128, %s699, %s684
        $region80: #{tpu_custom_call.1} parent=47 // pred_fallthru
          _
      $region48: #{tpu_custom_call.1} parent=5 // pred_fallthru
        _
      %p702 = scmp.le.s32.totalorder 2, %s25
      // Predicated region
      $region81: #{tpu_custom_call.1} parent=5 // pred_check
        %p703 = pneg %p702
      $region82: #{tpu_custom_call.1} parent=5 // pred_check_branch
        %705 = sbr.rel (%p703) target = $region84
      $region83: #{tpu_custom_call.1} parent=5 // pred_region
        %s706 = ssub.s32 %s25, 2
        // Predicated region
        $region85: #{tpu_custom_call.1} parent=83 // pred_check
          %p707 = pneg %p254
        $region86: #{tpu_custom_call.1} parent=83 // pred_check_branch
          %709 = sbr.rel (%p707) target = $region88
        $region87: #{tpu_custom_call.1} parent=83 // pred_region
          %s710 = sand.u32 %s239, 1
          %s711 = scalar_lea.sflag [#allocation5], %s710
          %s712 = sand.u32 %s239, 1
          %s713 = smul.addr %s712, 8
          %s714 = scalar_lea.vmem [#allocation12], %s713
          %716 = dma.done %s711, 128
        $region88: #{tpu_custom_call.1} parent=83 // pred_fallthru
          _
      $region84: #{tpu_custom_call.1} parent=5 // pred_fallthru
        _
    $region6: #{tpu_custom_call.1} parent=1 // loop_footer
      %s29 = sadd.s32 1, %s25
    $region7: #{tpu_custom_call.1} parent=1 // loop_footer_branch
      %24 = sbr.rel target = $region3
    $region8: #{tpu_custom_call.1} parent=1 // loop_exit
      _
    %717 = vsyncpa [#allocation4], 1
    %s718 = scalar_lea.sflag [#allocation4], 1
    %719 = vsyncpa %s718, 1
    %720 = vsyncpa [#allocation7], 1
    %s721 = scalar_lea.sflag [#allocation7], 1
    %722 = vsyncpa %s721, 1
    %723 = vsyncpa [#allocation10], 1
    %s724 = scalar_lea.sflag [#allocation10], 1
    %725 = vsyncpa %s724, 1
    %726 = vsyncpa [#allocation5], 1
    %s727 = scalar_lea.sflag [#allocation5], 1
    %728 = vsyncpa %s727, 1

</llo_original>
